<compile_context>
chip_gen: v6e
topology: v6e:2x2x1
jax: 0.10.0
libtpu: 0.0.40
codegen_flags: <defaults>
</compile_context>

<pallas_src>
import jax
import jax.numpy as jnp
from jax import lax
from jax.experimental import pallas as pl
from jax.experimental.pallas import tpu as pltpu

EPS = 1e-5


def _fused_kernel(x_ref, wt_ref, params_ref, o_ref):
    # x:      (N, 3)   f32
    # wt:     (3, 16)  f32 -- Linear weight already transposed host-side
    # params: (2, 16)  f32 -- row 0 = gamma, row 1 = beta (single DMA)
    x = x_ref[...]
    wt = wt_ref[...]

    # y = x @ w^T, canonical contraction (RHS pre-transposed -> no in-kernel
    # vxpose).  Linear bias and `other` cancel in the batch-mean subtraction
    # and leave the variance unchanged, so they never enter the kernel.
    y = jnp.dot(x, wt, preferred_element_type=jnp.float32)        # (N, 16)

    # Training-mode BatchNorm over the batch axis (NCHW with H=W=1), biased
    # variance via sum / sum-of-squares: one full-tile pass (y*y) for stats.
    inv_n = 1.0 / y.shape[0]                                      # static
    mean = jnp.sum(y, axis=0, keepdims=True) * inv_n              # (1, 16)
    mean_sq = jnp.sum(y * y, axis=0, keepdims=True) * inv_n       # (1, 16)
    var = mean_sq - mean * mean
    inv_std = lax.rsqrt(var + EPS)

    # Fold the affine into per-channel scale/shift before touching the
    # (N, 16) tile -> only two full-tile VPU passes (mul + add) remain.
    gamma = params_ref[0:1, :]                                    # (1, 16)
    beta = params_ref[1:2, :]                                     # (1, 16)
    scale = gamma * inv_std                                       # (1, 16)
    shift = beta - mean * scale                                   # (1, 16)
    o_ref[...] = y * scale + shift


def model_forward(x, w, b, other, gamma, beta):
    """x: (N, 3) f32, w: (16, 3), b/gamma/beta: (16,), other: (1, 16).

    Returns (N, 16) f32 == BatchNorm2d(Linear(x) + other) in training mode.
    `b` and `other` are accepted for API parity with the PyTorch module but
    cancel algebraically in the batch normalization, so they never leave the
    host side.
    """
    # TODO(synk): if PyTorch-faithful running_mean/running_var tracking (or
    # eval-mode BN) is ever needed, b + other must be re-introduced — the
    # cancellation only holds for the training-mode normalized output.
    del b, other
    n, in_f = x.shape
    out_f = w.shape[0]

    wt = jnp.transpose(w)                       # (3, 16); 192-byte host-side op
    params = jnp.stack([gamma, beta], axis=0)   # (2, 16); one DMA

    cost = pl.CostEstimate(
        flops=2 * n * in_f * out_f + 6 * n * out_f,
        transcendentals=out_f,  # one rsqrt per channel
        bytes_accessed=4 * (n * in_f + in_f * out_f + 2 * out_f + n * out_f),
    )

    return pl.pallas_call(
        _fused_kernel,
        out_shape=jax.ShapeDtypeStruct((n, out_f), jnp.float32),
        in_specs=[
            pl.BlockSpec(memory_space=pltpu.MemorySpace.VMEM),  # x
            pl.BlockSpec(memory_space=pltpu.MemorySpace.VMEM),  # w^T (3, 16)
            pl.BlockSpec(memory_space=pltpu.MemorySpace.VMEM),  # gamma/beta
        ],
        out_specs=pl.BlockSpec(memory_space=pltpu.MemorySpace.VMEM),
        cost_estimate=cost,
    )(x, wt, params)


def reference_forward(x, w, b, other, gamma, beta):
    v1 = x @ w.T + b
    v2 = v1 + other
    mean = jnp.mean(v2, axis=0, keepdims=True)
    var = jnp.mean((v2 - mean) ** 2, axis=0, keepdims=True)
    return (v2 - mean) / jnp.sqrt(var + EPS) * gamma.reshape(1, -1) \
        + beta.reshape(1, -1)


if __name__ == "__main__":
    key = jax.random.PRNGKey(0)
    k_x, k_other, k_w, k_b = jax.random.split(key, 4)

    # batch > 1 so training-mode batch statistics are well-defined
    N, IN_F, OUT_F = 8, 3, 16

    x = jax.random.normal(k_x, (N, IN_F), dtype=jnp.float32)
    other = jax.random.normal(k_other, (1, OUT_F), dtype=jnp.float32)

    # Deterministic synthetic params mirroring nn.Linear(3, 16) init shapes.
    bound = 1.0 / jnp.sqrt(IN_F)
    w = jax.random.uniform(k_w, (OUT_F, IN_F), minval=-bound, maxval=bound,
                           dtype=jnp.float32)
    b = jax.random.uniform(k_b, (OUT_F,), minval=-bound, maxval=bound,
                           dtype=jnp.float32)
    # BatchNorm2d default affine init: weight = 1, bias = 0.
    gamma = jnp.ones((OUT_F,), dtype=jnp.float32)
    beta = jnp.zeros((OUT_F,), dtype=jnp.float32)

    out = model_forward(x, w, b, other, gamma, beta)
    jax.block_until_ready(out)

    ref = reference_forward(x, w, b, other, gamma, beta)
    assert jnp.allclose(out, ref, atol=1e-5, rtol=1e-5), "mismatch vs reference"

    print("KERNEL_OK")
</pallas_src>

<mosaic_0001>
module attributes {stable_mosaic.version = 11 : i64} {
  func.func @_fused_kernel(%arg0: memref<8x3xf32, #tpu.memory_space<vmem>>, %arg1: memref<3x16xf32, #tpu.memory_space<vmem>>, %arg2: memref<2x16xf32, #tpu.memory_space<vmem>>, %arg3: memref<8x16xf32, #tpu.memory_space<vmem>>) attributes {dimension_semantics = [], scalar_prefetch = 0 : i64, scratch_operands = 0 : i64, tpu.core_type = #tpu.core_type<tc>} {
    %c0 = arith.constant 0 : index
    %c0_0 = arith.constant 0 : index
    %0 = vector.load %arg0[%c0, %c0_0] : memref<8x3xf32, #tpu.memory_space<vmem>>, vector<8x3xf32>
    %c0_1 = arith.constant 0 : index
    %c0_2 = arith.constant 0 : index
    %1 = vector.load %arg1[%c0_1, %c0_2] : memref<3x16xf32, #tpu.memory_space<vmem>>, vector<3x16xf32>
    %cst = arith.constant dense<0.000000e+00> : vector<8x16xf32>
    %2 = tpu.matmul %0, %1, %cst {dimension_numbers = #tpu.dot_dimension_numbers<[1], [0], [0], [1], [0, 0, 1, 1], [], []>} : vector<8x3xf32>, vector<3x16xf32>, vector<8x16xf32> -> vector<8x16xf32>
    %cst_3 = arith.constant dense<0.000000e+00> : vector<16xf32>
    %3 = vector.multi_reduction <add>, %2, %cst_3 [0] : vector<8x16xf32> to vector<16xf32>
    %4 = vector.shape_cast %3 : vector<16xf32> to vector<1x16xf32>
    %cst_4 = arith.constant 1.250000e-01 : f32
    %5 = vector.broadcast %cst_4 : f32 to vector<1x16xf32>
    %6 = arith.mulf %4, %5 : vector<1x16xf32>
    %7 = arith.mulf %2, %2 : vector<8x16xf32>
    %cst_5 = arith.constant dense<0.000000e+00> : vector<16xf32>
    %8 = vector.multi_reduction <add>, %7, %cst_5 [0] : vector<8x16xf32> to vector<16xf32>
    %9 = vector.shape_cast %8 : vector<16xf32> to vector<1x16xf32>
    %cst_6 = arith.constant 1.250000e-01 : f32
    %10 = vector.broadcast %cst_6 : f32 to vector<1x16xf32>
    %11 = arith.mulf %9, %10 : vector<1x16xf32>
    %12 = arith.mulf %6, %6 : vector<1x16xf32>
    %13 = arith.subf %11, %12 : vector<1x16xf32>
    %cst_7 = arith.constant 9.99999974E-6 : f32
    %14 = vector.broadcast %cst_7 : f32 to vector<1x16xf32>
    %15 = arith.addf %13, %14 : vector<1x16xf32>
    %16 = math.rsqrt %15 : vector<1x16xf32>
    %c0_8 = arith.constant 0 : index
    %c0_9 = arith.constant 0 : index
    %17 = vector.load %arg2[%c0_8, %c0_9] : memref<2x16xf32, #tpu.memory_space<vmem>>, vector<1x16xf32>
    %c1 = arith.constant 1 : index
    %c0_10 = arith.constant 0 : index
    %18 = vector.load %arg2[%c1, %c0_10] : memref<2x16xf32, #tpu.memory_space<vmem>>, vector<1x16xf32>
    %19 = arith.mulf %17, %16 : vector<1x16xf32>
    %20 = arith.mulf %6, %19 : vector<1x16xf32>
    %21 = arith.subf %18, %20 : vector<1x16xf32>
    %22 = vector.broadcast %19 : vector<1x16xf32> to vector<8x16xf32>
    %23 = arith.mulf %2, %22 : vector<8x16xf32>
    %24 = vector.broadcast %21 : vector<1x16xf32> to vector<8x16xf32>
    %25 = arith.addf %23, %24 : vector<8x16xf32>
    %c0_11 = arith.constant 0 : index
    %c0_12 = arith.constant 0 : index
    %26 = vector.load %arg3[%c0_11, %c0_12] : memref<8x16xf32, #tpu.memory_space<vmem>>, vector<8x16xf32>
    tpu.vector_store %arg3[%c0_11, %c0_12], %25 {strides = array<i32>} : memref<8x16xf32, #tpu.memory_space<vmem>>, vector<8x16xf32>,
    return
  }
}

</mosaic_0001>

<llo_original>
// kernel: tpu_custom_call.1
$region0: #{tpu_custom_call.1}
  #allocation0 [shape = 'u32[]', space=smem, size = 0x4, offset = 0x4, fixed_abs, tag = 'smem constant byte address 0x4 - core index']
  #allocation1 [shape = 'u32[144,128]{1,0:T(1,128)}', space=vmem, size = 0x12000, scoped, tag = 'internal scratch']
  %s0 = inlined_call_operand.vmem [shape: f32[8,3], index: 0, kind: input, shape index: {}]
  %s1 = inlined_call_operand.vmem [shape: f32[3,16], index: 1, kind: input, shape index: {}]
  %s2 = inlined_call_operand.vmem [shape: f32[2,16], index: 2, kind: input, shape index: {}]
  %s3 = inlined_call_operand.hbm [shape: f32[8,16], index: 3, kind: output, shape index: {}]
  %s4 = sld [smem:[#allocation0]]
  $region22: #{tpu_custom_call.1} parent=0
    _
  %s6 = ssub.s32 1, %s4
  %s7 = scalar_select 0, %s6, %s4
  $region1: #{tpu_custom_call.1} parent=0
    #allocation2 [shape = 'u8[4096]{0}', space=vmem, size = 0x1000, scoped, tag = 'output window, operand 0, single buffered']
    #allocation3 [shape = 's32[1]{0}', space=sflag, size = 0x4, scoped, tag = 'scoped memory for tpu_custom_call.1']
    %8 = vsyncpa [#allocation3], 0
    // Predicated region
    $region2: #{tpu_custom_call.1} parent=1 // pred_check
      _
    $region3: #{tpu_custom_call.1} parent=1 // pred_check_branch
      %10 = sbr.rel (0) target = $region5
    $region4: #{tpu_custom_call.1} parent=1 // pred_region
      _
    $region5: #{tpu_custom_call.1} parent=1 // pred_fallthru
      _
    // Predicated region
    $region6: #{tpu_custom_call.1} parent=1 // pred_check
      _
    $region7: #{tpu_custom_call.1} parent=1 // pred_check_branch
      %12 = sbr.rel (0) target = $region9
    $region8: #{tpu_custom_call.1} parent=1 // pred_region
      _
    $region9: #{tpu_custom_call.1} parent=1 // pred_fallthru
      _
    // Predicated region
    $region10: #{tpu_custom_call.1} parent=1 // pred_check
      _
    $region11: #{tpu_custom_call.1} parent=1 // pred_check_branch
      %14 = sbr.rel (0) target = $region13
    $region12: #{tpu_custom_call.1} parent=1 // pred_region
      _
    $region13: #{tpu_custom_call.1} parent=1 // pred_fallthru
      _
    %v15 = vld [vmem:[%s0] sm:$0xff]
    %v16 = vld [vmem:[%s1] sm:$0x7]
    %vm17 = vcmask 23552
    %v19 = vsel %vm17, %v15, 0
    %vm21 = vcmask 1042432
    %v23 = vsel %vm21, %v16, 0
    %25 = vmatprep.subr.mxu0 0.0
    %26 = vmatpush1.msra.mxu0 0.0
    %27 = vmatprep.subr.mxu0 0.0
    %28 = vmatpush1.msra.mxu0 0.0
    %29 = vmatprep.subr.mxu0 0.0
    %30 = vmatpush1.msra.mxu0 0.0
    %31 = vmatprep.subr.mxu0 0.0
    %32 = vmatpush1.msra.mxu0 0.0
    %33 = vmatprep.subr.mxu0 0.0
    %34 = vmatpush1.msra.mxu0 0.0
    %35 = vmatprep.subr.mxu0 0.0
    %36 = vmatpush1.msra.mxu0 0.0
    %37 = vmatprep.subr.mxu0 0.0
    %38 = vmatpush1.msra.mxu0 0.0
    %39 = vmatprep.subr.mxu0 0.0
    %40 = vmatpush1.msra.mxu0 0.0
    %41 = vmatprep.subr.mxu0 0.0
    %42 = vmatpush1.msra.mxu0 0.0
    %43 = vmatprep.subr.mxu0 0.0
    %44 = vmatpush1.msra.mxu0 0.0
    %45 = vmatprep.subr.mxu0 0.0
    %46 = vmatpush1.msra.mxu0 0.0
    %47 = vmatprep.subr.mxu0 0.0
    %48 = vmatpush1.msra.mxu0 0.0
    %49 = vmatprep.subr.mxu0 0.0
    %50 = vmatpush1.msra.mxu0 0.0
    %51 = vmatprep.subr.mxu0 0.0
    %52 = vmatpush1.msra.mxu0 0.0
    %53 = vmatprep.subr.mxu0 0.0
    %54 = vmatpush1.msra.mxu0 0.0
    %55 = vmatprep.subr.mxu0 0.0
    %56 = vmatpush1.msra.mxu0 %v23
    %57 = vmatprep.subr.mxu0 0.0
    %58 = vmatpush2.msra.mxu0 0.0
    %59 = vmatprep.subr.mxu0 0.0
    %60 = vmatpush2.msra.mxu0 0.0
    %61 = vmatprep.subr.mxu0 0.0
    %62 = vmatpush2.msra.mxu0 0.0
    %63 = vmatprep.subr.mxu0 0.0
    %64 = vmatpush2.msra.mxu0 0.0
    %65 = vmatprep.subr.mxu0 0.0
    %66 = vmatpush2.msra.mxu0 0.0
    %67 = vmatprep.subr.mxu0 0.0
    %68 = vmatpush2.msra.mxu0 0.0
    %69 = vmatprep.subr.mxu0 0.0
    %70 = vmatpush2.msra.mxu0 0.0
    %71 = vmatprep.subr.mxu0 0.0
    %72 = vmatpush2.msra.mxu0 0.0
    %73 = vmatprep.subr.mxu0 0.0
    %74 = vmatpush2.msra.mxu0 0.0
    %75 = vmatprep.subr.mxu0 0.0
    %76 = vmatpush2.msra.mxu0 0.0
    %77 = vmatprep.subr.mxu0 0.0
    %78 = vmatpush2.msra.mxu0 0.0
    %79 = vmatprep.subr.mxu0 0.0
    %80 = vmatpush2.msra.mxu0 0.0
    %81 = vmatprep.subr.mxu0 0.0
    %82 = vmatpush2.msra.mxu0 0.0
    %83 = vmatprep.subr.mxu0 0.0
    %84 = vmatpush2.msra.mxu0 0.0
    %85 = vmatprep.subr.mxu0 0.0
    %86 = vmatpush2.msra.mxu0 0.0
    %87 = vmatprep.subr.mxu0 0.0
    %88 = vmatpush2.msra.mxu0 0.0
    %89 = vmatprep.mubr.f32.mxu0 0.0
    %90 = vmatmul.mubr.f32.gmra.mxu0 %v19
    %v91 = vpop.f32.mrf.mxu0
    %v92 = vadd.f32 0.0, %v91
    %v93 = vpop.f32.mrf.mxu0
    %94 = vdwg.mxu0
    %vm95 = vcmask 130048
    %v96 = vsel %vm95, %v92, 0.0
    %v97 = vrot.slane %v96, 4
    %v98 = vadd.f32 %v96, %v97
    %v99 = vrot.slane %v98, 2
    %v100 = vadd.f32 %v98, %v99
    %v101 = vrot.slane %v100, 1
    %v102 = vadd.f32 %v100, %v101
    %v103 = vmul.f32 %v102, 0.125
    %v104 = vmul.f32 %v92, %v92
    %v105 = vsel %vm95, %v104, 0.0
    %v106 = vrot.slane %v105, 4
    %v107 = vadd.f32 %v105, %v106
    %v108 = vrot.slane %v107, 2
    %v109 = vadd.f32 %v107, %v108
    %v110 = vrot.slane %v109, 1
    %v111 = vadd.f32 %v109, %v110
    %v112 = vmul.f32 %v111, 0.125
    %v113 = vmul.f32 %v103, %v103
    %v114 = vsub.f32 %v112, %v113
    %v115 = vadd.f32 %v114, 1e-05
    %v116 = vrsqrt.pop %v115
    %v117 = vld [vmem:[%s2] sm:$0x1]
    %v118 = vld [vmem:[%s2 + $0x1] sm:$0x1]
    %v119 = vmul.f32 %v117, %v116
    %v120 = vmul.f32 %v103, %v119
    %v121 = vsub.f32 %v118, %v120
    %v122 = vlaneseq
    %v123 = vshrl.u32 %v122, 7
    %v124 = vsub.s32 0, %v123
    %v125 = vrot.slane %v119, %v124
    %v126 = vmul.f32 %v92, %v125
    %v127 = vlaneseq
    %v128 = vshrl.u32 %v127, 7
    %v129 = vsub.s32 0, %v128
    %v130 = vrot.slane %v121, %v129
    %v131 = vadd.f32 %v126, %v130
    %132 = vst.msk [vmem:[#allocation2] sm:$0xff] %vm95, %v131
    // Predicated region
    $region14: #{tpu_custom_call.1} parent=1 // pred_check
      _
    $region15: #{tpu_custom_call.1} parent=1 // pred_check_branch
      %134 = sbr.rel (0) target = $region17
    $region16: #{tpu_custom_call.1} parent=1 // pred_region
      %s136 = ssub.s32 128, 128
      %137 = vsyncadd [#allocation3], %s136
      %s139 = sshll.u32 [#allocation2], 4
      %s140 = int_to_ptr.vmem [resolvable:$true] %s139
      %142 = dma.vmem_to_hbm [thread:$0]  %s140, 128, %s3, [#allocation3]
    $region17: #{tpu_custom_call.1} parent=1 // pred_fallthru
      _
    // Predicated region
    $region18: #{tpu_custom_call.1} parent=1 // pred_check
      _
    $region19: #{tpu_custom_call.1} parent=1 // pred_check_branch
      %144 = sbr.rel (0) target = $region21
    $region20: #{tpu_custom_call.1} parent=1 // pred_region
      %145 = dma.done [#allocation3], 128
    $region21: #{tpu_custom_call.1} parent=1 // pred_fallthru
      _
    %146 = vsyncpa [#allocation3], 1

</llo_original>
